<compile_context>
chip_gen: v6e
topology: v6e:2x2x1
jax: 0.10.0
libtpu: 0.0.40
codegen_flags: <defaults>
</compile_context>

<pallas_src>
import jax
import jax.numpy as jnp
from jax.experimental import pallas as pl
from jax.experimental.pallas import tpu as pltpu


def _leaky_relu(x, slope=0.2):
    return jnp.where(x > 0, x, slope * x)


def ae_decoder_kernel(z_ref, w1_ref, b1_ref, w2_ref, b2_ref, w3_ref, b3_ref,
                      out_ref):
    compute_dtype = w2_ref.dtype  # bf16 (or whatever prepare() picked)

    # dec_1: Linear(n_z, d1) + LeakyReLU(0.2)   (bf16 operands, f32 accum)
    h1 = jnp.dot(z_ref[...], w1_ref[...],
                 preferred_element_type=jnp.float32) + b1_ref[...]
    h1 = _leaky_relu(h1)

    # dec_2: Linear(d1, d2) + LeakyReLU(0.2)
    h2 = jnp.dot(h1.astype(compute_dtype), w2_ref[...],
                 preferred_element_type=jnp.float32) + b2_ref[...]
    h2 = _leaky_relu(h2)

    # x_bar_layer: Linear(d2, n_input)  (no activation)
    x_hat = jnp.dot(h2.astype(compute_dtype), w3_ref[...],
                    preferred_element_type=jnp.float32) + b3_ref[...]
    out_ref[...] = x_hat.astype(out_ref.dtype)


def _round_up(x, m):
    return ((x + m - 1) // m) * m


def _vmem_limit_bytes():
    """Generation-aware scoped-VMEM limit: 3/4 of physical capacity
    (96 MiB on 128 MiB v5e/v6e, 48 MiB on 64 MiB v7x).  Conservative
    fallback assumes the smallest part (v7x)."""
    cap = None
    try:
        info = pltpu.get_tpu_info()
        cap = getattr(info, "vmem_capacity_bytes", None)
    except Exception:
        cap = None
    if not cap:
        cap = 64 * 1024 * 1024
    return int(cap) * 3 // 4


def _choose_block_b(b_pad128, n_z_p, d1p, d2p, n_out_p, *,
                    in_bytes, out_bytes, vmem_budget,
                    target_steps=4, max_block_b=8192):
    """Largest batch tile (multiple of 128) that fits the VMEM budget while
    keeping >= target_steps grid steps when the batch allows (so ("parallel",)
    shards across v7x's two TensorCores and each core still pipelines its
    input/output DMAs)."""
    # Weights/biases use a constant block index (no re-DMA across steps), but
    # Mosaic still allocates 2 buffers per input by default -> 2x footprint.
    weights = 2 * ((n_z_p * d1p + d1p * d2p + d2p * n_out_p) * in_bytes
                   + (d1p + d2p + n_out_p) * 4)
    per_row = (2 * n_z_p * in_bytes          # z tile, double-buffered
               + 2 * n_out_p * out_bytes     # out tile, double-buffered
               + (d1p + d2p + n_out_p) * 4)  # h1/h2/x_hat f32 temporaries
    avail = max(vmem_budget - weights, per_row * 128)
    bb_budget = max(128, (avail // per_row) // 128 * 128)
    bb_steps = max(128, (b_pad128 // max(target_steps, 1)) // 128 * 128)
    return int(max(128, min(bb_budget, bb_steps, b_pad128, max_block_b)))


def prepare_decoder_params(params, compute_dtype=jnp.bfloat16):
    """One-time padding + cast of the decoder parameters (lane-dense feature
    dims, n_z padded to 128, bf16 weights, f32 biases).  Cache the result and
    reuse it across ae_decoder calls."""
    w1, b1, w2, b2, w3, b3 = params
    n_z, d1 = w1.shape
    d2, n_input = w2.shape[1], w3.shape[1]
    n_z_p = _round_up(n_z, 128)
    d1p, d2p, n_out_p = (_round_up(d1, 128), _round_up(d2, 128),
                         _round_up(n_input, 128))

    def pad2(a, rows, cols):
        return jnp.pad(a, ((0, rows - a.shape[0]), (0, cols - a.shape[1])))

    b1 = jnp.asarray(b1).reshape(1, -1)
    b2 = jnp.asarray(b2).reshape(1, -1)
    b3 = jnp.asarray(b3).reshape(1, -1)

    return {
        "w1": pad2(w1, n_z_p, d1p).astype(compute_dtype),
        "b1": pad2(b1, 1, d1p).astype(jnp.float32),
        "w2": pad2(w2, d1p, d2p).astype(compute_dtype),
        "b2": pad2(b2, 1, d2p).astype(jnp.float32),
        "w3": pad2(w3, d2p, n_out_p).astype(compute_dtype),
        "b3": pad2(b3, 1, n_out_p).astype(jnp.float32),
        "dims": (n_z, n_z_p, d1p, d2p, n_input, n_out_p),
        "compute_dtype": compute_dtype,
    }


def ae_decoder(z_ae, params, *, block_b=None, out_dtype=None, trim=True):
    """Forward pass of AE_decoder. z_ae: [B, n_z]. `params` may be raw
    (w1,b1,w2,b2,w3,b3) or the output of prepare_decoder_params()."""
    if not isinstance(params, dict):
        params = prepare_decoder_params(params)
    n_z, n_z_p, d1p, d2p, n_input, n_out_p = params["dims"]
    compute_dtype = params["compute_dtype"]

    B, n_z_in = z_ae.shape
    assert n_z_in == n_z, "latent dim mismatch"
    if out_dtype is None:
        out_dtype = z_ae.dtype
    in_bytes = jnp.dtype(compute_dtype).itemsize
    out_bytes = jnp.dtype(out_dtype).itemsize

    vmem_limit = _vmem_limit_bytes()
    b_pad128 = _round_up(B, 128)
    if block_b is None:
        block_b = _choose_block_b(
            b_pad128, n_z_p, d1p, d2p, n_out_p,
            in_bytes=in_bytes, out_bytes=out_bytes,
            vmem_budget=vmem_limit - (4 << 20))  # headroom for compiler scratch
    B_pad = _round_up(B, block_b)

    # Single fused pad (batch rows + lane-dense z columns) + bf16 cast.
    zp = jnp.pad(z_ae, ((0, B_pad - B), (0, n_z_p - n_z))).astype(compute_dtype)

    grid = (B_pad // block_b,)

    # Weights/biases: constant block index -> resident in VMEM, no re-DMA
    # across grid steps (double-buffer footprint already accounted for in the
    # block_b budget).
    w_spec = lambda shape: pl.BlockSpec(shape, lambda i: (0, 0))

    flops = 2 * B_pad * (n_z_p * d1p + d1p * d2p + d2p * n_out_p)
    bytes_accessed = (B_pad * n_z_p * in_bytes
                      + (n_z_p * d1p + d1p * d2p + d2p * n_out_p) * in_bytes
                      + (d1p + d2p + n_out_p) * 4
                      + B_pad * n_out_p * out_bytes)

    out = pl.pallas_call(
        ae_decoder_kernel,
        out_shape=jax.ShapeDtypeStruct((B_pad, n_out_p), out_dtype),
        grid_spec=pltpu.PrefetchScalarGridSpec(
            num_scalar_prefetch=0,
            grid=grid,
            in_specs=[
                pl.BlockSpec((block_b, n_z_p), lambda i: (i, 0)),  # z tile
                w_spec((n_z_p, d1p)),    # W1 (bf16)
                w_spec((1, d1p)),        # b1 (f32)
                w_spec((d1p, d2p)),      # W2 (bf16)
                w_spec((1, d2p)),        # b2 (f32)
                w_spec((d2p, n_out_p)),  # W3 (bf16)
                w_spec((1, n_out_p)),    # b3 (f32)
            ],
            out_specs=pl.BlockSpec((block_b, n_out_p), lambda i: (i, 0)),
        ),
        compiler_params=pltpu.CompilerParams(
            dimension_semantics=("parallel",),
            vmem_limit_bytes=int(vmem_limit)),
        cost_estimate=pl.CostEstimate(flops=int(flops), transcendentals=0,
                                      bytes_accessed=int(bytes_accessed)),
    )(zp, params["w1"], params["b1"], params["w2"], params["b2"],
      params["w3"], params["b3"])

    if trim:
        if n_out_p != n_input:
            out = out[:B, :n_input]
        elif B_pad != B:
            out = out[:B]          # rows-only trim keeps lane-dense columns
    return out


def init_params(key, n_z, ae_n_dec_1, ae_n_dec_2, n_input):
    """Deterministic init mimicking torch.nn.Linear (U[-1/sqrt(fan_in), +])."""
    def linear(k, fan_in, fan_out):
        kw, kb = jax.random.split(k)
        bound = 1.0 / jnp.sqrt(fan_in)
        w = jax.random.uniform(kw, (fan_in, fan_out), jnp.float32, -bound, bound)
        b = jax.random.uniform(kb, (1, fan_out), jnp.float32, -bound, bound)
        return w, b

    k1, k2, k3 = jax.random.split(key, 3)
    w1, b1 = linear(k1, n_z, ae_n_dec_1)
    w2, b2 = linear(k2, ae_n_dec_1, ae_n_dec_2)
    w3, b3 = linear(k3, ae_n_dec_2, n_input)
    return (w1, b1, w2, b2, w3, b3)


def ae_decoder_ref(z_ae, params):
    """Pure-JAX f32 reference for correctness check."""
    w1, b1, w2, b2, w3, b3 = params
    h1 = jax.nn.leaky_relu(z_ae @ w1 + b1, 0.2)
    h2 = jax.nn.leaky_relu(h1 @ w2 + b2, 0.2)
    return h2 @ w3 + b3


if __name__ == "__main__":
    # Shapes consistent with the module: n_z=32 latent, decoder widths
    # 64 -> 128, reconstructed n_input=256.  B=512 -> block_b=128, 4 grid
    # steps: 2 steps per v7x TensorCore so the DMA pipeline and megacore
    # sharding are both exercised; n_input already lane-aligned so no
    # post-call slice is needed.
    B, n_z, ae_n_dec_1, ae_n_dec_2, n_input = 512, 32, 64, 128, 256

    key = jax.random.PRNGKey(0)
    k_z, k_p = jax.random.split(key)
    z_ae = jax.random.normal(k_z, (B, n_z), jnp.float32)
    params = init_params(k_p, n_z, ae_n_dec_1, ae_n_dec_2, n_input)

    # One-time param preparation (padding + bf16 cast), reused across calls.
    prepared = prepare_decoder_params(params)

    out = ae_decoder(z_ae, prepared)
    out = jax.block_until_ready(out)

    ref = ae_decoder_ref(z_ae, params)
    assert out.shape == (B, n_input)
    # bf16 matmul operands (f32 accumulation) -> loosened tolerance vs f32 ref.
    assert jnp.allclose(out, ref, atol=5e-2, rtol=5e-2), "mismatch vs reference"

    print("KERNEL_OK")
</pallas_src>

<mosaic_0001>
module attributes {stable_mosaic.version = 11 : i64} {
  func.func @ae_decoder_kernel(%arg0: i32, %arg1: memref<128x128xbf16, #tpu.memory_space<vmem>>, %arg2: memref<128x128xbf16, #tpu.memory_space<vmem>>, %arg3: memref<1x128xf32, #tpu.memory_space<vmem>>, %arg4: memref<128x128xbf16, #tpu.memory_space<vmem>>, %arg5: memref<1x128xf32, #tpu.memory_space<vmem>>, %arg6: memref<128x256xbf16, #tpu.memory_space<vmem>>, %arg7: memref<1x256xf32, #tpu.memory_space<vmem>>, %arg8: memref<128x256xf32, #tpu.memory_space<vmem>>) attributes {dimension_semantics = [#tpu.dimension_semantics<parallel>], iteration_bounds = array<i64: 4>, scalar_prefetch = 0 : i64, scratch_operands = 0 : i64, tpu.core_type = #tpu.core_type<tc>, window_params = [{transform_indices = @transform_0, window_bounds = array<i64: 128, 128>}, {pipeline_mode = #tpu.pipeline_mode<synchronous>, transform_indices = @transform_1, window_bounds = array<i64: 128, 128>}, {pipeline_mode = #tpu.pipeline_mode<synchronous>, transform_indices = @transform_2, window_bounds = array<i64: 1, 128>}, {pipeline_mode = #tpu.pipeline_mode<synchronous>, transform_indices = @transform_3, window_bounds = array<i64: 128, 128>}, {pipeline_mode = #tpu.pipeline_mode<synchronous>, transform_indices = @transform_4, window_bounds = array<i64: 1, 128>}, {pipeline_mode = #tpu.pipeline_mode<synchronous>, transform_indices = @transform_5, window_bounds = array<i64: 128, 256>}, {pipeline_mode = #tpu.pipeline_mode<synchronous>, transform_indices = @transform_6, window_bounds = array<i64: 1, 256>}, {transform_indices = @transform_7, window_bounds = array<i64: 128, 256>}]} {
    %c0 = arith.constant 0 : index
    %c0_0 = arith.constant 0 : index
    %0 = vector.load %arg1[%c0, %c0_0] : memref<128x128xbf16, #tpu.memory_space<vmem>>, vector<128x128xbf16>
    %c0_1 = arith.constant 0 : index
    %c0_2 = arith.constant 0 : index
    %1 = vector.load %arg2[%c0_1, %c0_2] : memref<128x128xbf16, #tpu.memory_space<vmem>>, vector<128x128xbf16>
    %cst = arith.constant dense<0.000000e+00> : vector<128x128xf32>
    %2 = tpu.matmul %0, %1, %cst {dimension_numbers = #tpu.dot_dimension_numbers<[1], [0], [0], [1], [0, 0, 1, 1], [], []>} : vector<128x128xbf16>, vector<128x128xbf16>, vector<128x128xf32> -> vector<128x128xf32>
    %c0_3 = arith.constant 0 : index
    %c0_4 = arith.constant 0 : index
    %3 = vector.load %arg3[%c0_3, %c0_4] : memref<1x128xf32, #tpu.memory_space<vmem>>, vector<1x128xf32>
    %4 = vector.broadcast %3 : vector<1x128xf32> to vector<128x128xf32>
    %5 = arith.addf %2, %4 : vector<128x128xf32>
    %cst_5 = arith.constant 0.000000e+00 : f32
    %6 = vector.broadcast %cst_5 : f32 to vector<128x128xf32>
    %7 = arith.cmpf ogt, %5, %6 : vector<128x128xf32>
    %cst_6 = arith.constant 2.000000e-01 : f32
    %8 = vector.broadcast %cst_6 : f32 to vector<128x128xf32>
    %9 = arith.mulf %8, %5 : vector<128x128xf32>
    %10 = arith.select %7, %5, %9 : vector<128x128xi1>, vector<128x128xf32>
    %11 = arith.truncf %10 : vector<128x128xf32> to vector<128x128xbf16>
    %c0_7 = arith.constant 0 : index
    %c0_8 = arith.constant 0 : index
    %12 = vector.load %arg4[%c0_7, %c0_8] : memref<128x128xbf16, #tpu.memory_space<vmem>>, vector<128x128xbf16>
    %cst_9 = arith.constant dense<0.000000e+00> : vector<128x128xf32>
    %13 = tpu.matmul %11, %12, %cst_9 {dimension_numbers = #tpu.dot_dimension_numbers<[1], [0], [0], [1], [0, 0, 1, 1], [], []>} : vector<128x128xbf16>, vector<128x128xbf16>, vector<128x128xf32> -> vector<128x128xf32>
    %c0_10 = arith.constant 0 : index
    %c0_11 = arith.constant 0 : index
    %14 = vector.load %arg5[%c0_10, %c0_11] : memref<1x128xf32, #tpu.memory_space<vmem>>, vector<1x128xf32>
    %15 = vector.broadcast %14 : vector<1x128xf32> to vector<128x128xf32>
    %16 = arith.addf %13, %15 : vector<128x128xf32>
    %cst_12 = arith.constant 0.000000e+00 : f32
    %17 = vector.broadcast %cst_12 : f32 to vector<128x128xf32>
    %18 = arith.cmpf ogt, %16, %17 : vector<128x128xf32>
    %cst_13 = arith.constant 2.000000e-01 : f32
    %19 = vector.broadcast %cst_13 : f32 to vector<128x128xf32>
    %20 = arith.mulf %19, %16 : vector<128x128xf32>
    %21 = arith.select %18, %16, %20 : vector<128x128xi1>, vector<128x128xf32>
    %22 = arith.truncf %21 : vector<128x128xf32> to vector<128x128xbf16>
    %c0_14 = arith.constant 0 : index
    %c0_15 = arith.constant 0 : index
    %23 = vector.load %arg6[%c0_14, %c0_15] : memref<128x256xbf16, #tpu.memory_space<vmem>>, vector<128x256xbf16>
    %cst_16 = arith.constant dense<0.000000e+00> : vector<128x256xf32>
    %24 = tpu.matmul %22, %23, %cst_16 {dimension_numbers = #tpu.dot_dimension_numbers<[1], [0], [0], [1], [0, 0, 1, 1], [], []>} : vector<128x128xbf16>, vector<128x256xbf16>, vector<128x256xf32> -> vector<128x256xf32>
    %c0_17 = arith.constant 0 : index
    %c0_18 = arith.constant 0 : index
    %25 = vector.load %arg7[%c0_17, %c0_18] : memref<1x256xf32, #tpu.memory_space<vmem>>, vector<1x256xf32>
    %26 = vector.broadcast %25 : vector<1x256xf32> to vector<128x256xf32>
    %27 = arith.addf %24, %26 : vector<128x256xf32>
    %c0_19 = arith.constant 0 : index
    %c0_20 = arith.constant 0 : index
    %28 = vector.load %arg8[%c0_19, %c0_20] : memref<128x256xf32, #tpu.memory_space<vmem>>, vector<128x256xf32>
    tpu.vector_store %arg8[%c0_19, %c0_20], %27 {strides = array<i32>} : memref<128x256xf32, #tpu.memory_space<vmem>>, vector<128x256xf32>,
    return
  }
  func.func @transform_0(%arg0: i32) -> (i32, i32) {
    %c0_i32 = arith.constant 0 : i32
    %c0_i32_0 = arith.constant 0 : i32
    return %arg0, %c0_i32 : i32, i32
  }
  func.func @transform_1(%arg0: i32) -> (i32, i32) {
    %c0_i32 = arith.constant 0 : i32
    %c0_i32_0 = arith.constant 0 : i32
    %c0_i32_1 = arith.constant 0 : i32
    return %c0_i32, %c0_i32_0 : i32, i32
  }
  func.func @transform_2(%arg0: i32) -> (i32, i32) {
    %c0_i32 = arith.constant 0 : i32
    %c0_i32_0 = arith.constant 0 : i32
    %c0_i32_1 = arith.constant 0 : i32
    return %c0_i32, %c0_i32_0 : i32, i32
  }
  func.func @transform_3(%arg0: i32) -> (i32, i32) {
    %c0_i32 = arith.constant 0 : i32
    %c0_i32_0 = arith.constant 0 : i32
    %c0_i32_1 = arith.constant 0 : i32
    return %c0_i32, %c0_i32_0 : i32, i32
  }
  func.func @transform_4(%arg0: i32) -> (i32, i32) {
    %c0_i32 = arith.constant 0 : i32
    %c0_i32_0 = arith.constant 0 : i32
    %c0_i32_1 = arith.constant 0 : i32
    return %c0_i32, %c0_i32_0 : i32, i32
  }
  func.func @transform_5(%arg0: i32) -> (i32, i32) {
    %c0_i32 = arith.constant 0 : i32
    %c0_i32_0 = arith.constant 0 : i32
    %c0_i32_1 = arith.constant 0 : i32
    return %c0_i32, %c0_i32_0 : i32, i32
  }
  func.func @transform_6(%arg0: i32) -> (i32, i32) {
    %c0_i32 = arith.constant 0 : i32
    %c0_i32_0 = arith.constant 0 : i32
    %c0_i32_1 = arith.constant 0 : i32
    return %c0_i32, %c0_i32_0 : i32, i32
  }
  func.func @transform_7(%arg0: i32) -> (i32, i32) {
    %c0_i32 = arith.constant 0 : i32
    %c0_i32_0 = arith.constant 0 : i32
    return %arg0, %c0_i32 : i32, i32
  }
}

</mosaic_0001>

<llo_original>
// kernel: tpu_custom_call.1
$region0: #{tpu_custom_call.1}
  #allocation0 [shape = 'u32[]', space=smem, size = 0x4, offset = 0x4, fixed_abs, tag = 'smem constant byte address 0x4 - core index']
  #allocation1 [shape = 'u32[144,128]{1,0:T(1,128)}', space=vmem, size = 0x12000, scoped, tag = 'internal scratch']
  %s0 = inlined_call_operand.hbm [shape: bf16[512,128], index: 0, kind: input, shape index: {}]
  %s1 = inlined_call_operand.hbm [shape: bf16[128,128], index: 1, kind: input, shape index: {}]
  %s2 = inlined_call_operand.vmem [shape: f32[1,128], index: 2, kind: input, shape index: {}]
  %s3 = inlined_call_operand.hbm [shape: bf16[128,128], index: 3, kind: input, shape index: {}]
  %s4 = inlined_call_operand.vmem [shape: f32[1,128], index: 4, kind: input, shape index: {}]
  %s5 = inlined_call_operand.hbm [shape: bf16[128,256], index: 5, kind: input, shape index: {}]
  %s6 = inlined_call_operand.vmem [shape: f32[1,256], index: 6, kind: input, shape index: {}]
  %s7 = inlined_call_operand.hbm [shape: f32[512,256], index: 7, kind: output, shape index: {}]
  %s8 = sld [smem:[#allocation0]]
  $region77: #{tpu_custom_call.1} parent=0
    _
  %s10 = ssub.s32 1, %s8
  %s11 = scalar_select 0, %s10, %s8
  $region1: #{tpu_custom_call.1} parent=0
    #allocation2 [shape = 'u8[65536]{0}', space=vmem, size = 0x10000, scoped, tag = 'input window, operand 0']
    #allocation3 [shape = 's32[2]{0}', space=sflag, size = 0x8, scoped, tag = 'scoped memory for tpu_custom_call.1']
    #allocation4 [shape = 's32[2]{0}', space=sflag, size = 0x8, scoped, tag = 'scoped memory for tpu_custom_call.1']
    #allocation5 [shape = 'u8[32768]{0}', space=vmem, size = 0x8000, scoped, tag = 'input window, operand 1, single buffered']
    #allocation6 [shape = 's32[1]{0}', space=sflag, size = 0x4, scoped, tag = 'scoped memory for tpu_custom_call.1']
    #allocation7 [shape = 'u8[32768]{0}', space=vmem, size = 0x8000, scoped, tag = 'input window, operand 3, single buffered']
    #allocation8 [shape = 'u8[65536]{0}', space=vmem, size = 0x10000, scoped, tag = 'input window, operand 5, single buffered']
    #allocation9 [shape = 's32[1]{0}', space=sflag, size = 0x4, scoped, tag = 'scoped memory for tpu_custom_call.1']
    #allocation10 [shape = 'u8[262144]{0}', space=vmem, size = 0x40000, scoped, tag = 'output window, operand 0']
    %12 = vsyncpa [#allocation3], 0
    %s13 = scalar_lea.sflag [#allocation3], 1
    %14 = vsyncpa %s13, 0
    %15 = vsyncpa [#allocation6], 0
    %16 = vsyncpa [#allocation9], 0
    %17 = vsyncpa [#allocation4], 0
    %s18 = scalar_lea.sflag [#allocation4], 1
    %19 = vsyncpa %s18, 0
    loop: start=0, step=1, limit=6
    $region2: #{tpu_custom_call.1} parent=1 // loop_pre_header
      _
    $region3: #{tpu_custom_call.1} parent=1 // loop_header
      %s21 = sphi 0, %s25
      %p22 = scmp.ge.s32.totalorder %s21, 6
      %s31 = sphi 0, %s33
      %s34 = sphi 0, %s31
      %s35 = sphi 0, %s34
      %s51 = sphi 0, %s35
      %s55 = sphi 0, %s55
      %s57 = sphi 0, %s55
      %s58 = sphi 0, %s57
      %s72 = sphi 0, %s58
      %s76 = sphi 0, %s76
      %s78 = sphi 0, %s76
      %s79 = sphi 0, %s78
      %s93 = sphi 0, %s79
      %s97 = sphi 0, %s97
      %s99 = sphi 0, %s97
      %s100 = sphi 0, %s99
      %s114 = sphi 0, %s100
      %s118 = sphi 0, %s118
      %s120 = sphi 0, %s118
      %s121 = sphi 0, %s120
      %s135 = sphi 0, %s121
      %s139 = sphi 0, %s139
      %s141 = sphi 0, %s139
      %s142 = sphi 0, %s141
      %s156 = sphi 0, %s142
      %s160 = sphi 0, %s160
      %s162 = sphi 0, %s160
      %s163 = sphi 0, %s162
      %s177 = sphi 0, %s163
      %s183 = sphi 0, %s185
      %s186 = sphi 0, %s183
      %s187 = sphi 0, %s186
      %s203 = sphi 0, %s187
    $region4: #{tpu_custom_call.1} parent=1 // loop_header_branch
      %24 = sbr.rel (%p22) target = $region8
    $region5: #{tpu_custom_call.1} parent=1 // loop_body
      %s26 = ssub.s32 %s21, 1
      %s27 = ssub.s32 %s21, 2
      %s28 = sadd.s32 %s21, 1
      %s29 = ssub.s32 %s21, %s28
      %p30 = scmp.eq.s32.totalorder %s29, 0
      %s32 = sadd.s32 %s31, 1
      %s33 = scalar_select %p30, %s31, %s32
      %p36 = pneg %p30
      %p37 = scmp.eq.s32.totalorder %s21, 3
      %p38 = por %p36, %p37
      %p39 = scmp.ne.s32.totalorder %s31, %s34
      %p40 = scmp.eq.s32.totalorder %s21, 0
      %p41 = por %p39, %p40
      %p42 = scmp.ne.s32.totalorder %s31, %s34
      %p43 = scmp.eq.s32.totalorder %s26, 3
      %p44 = por %p42, %p43
      %p45 = scmp.ne.s32.totalorder %s34, %s35
      %p46 = scmp.eq.s32.totalorder %s26, 0
      %p47 = por %p45, %p46
      %p48 = scmp.ne.s32.totalorder %s34, %s35
      %p49 = scmp.eq.s32.totalorder %s27, 3
      %p50 = por %p48, %p49
      %p52 = scmp.ne.s32.totalorder %s35, %s51
      %p53 = scmp.eq.s32.totalorder %s27, 0
      %p54 = por %p52, %p53
      %s56 = sadd.s32 %s55, 1
      %p59 = scmp.eq.s32.totalorder %s21, 3
      %p60 = scmp.ne.s32.totalorder %s55, %s57
      %p61 = scmp.eq.s32.totalorder %s21, 0
      %p62 = por %p60, %p61
      %p63 = scmp.ne.s32.totalorder %s55, %s57
      %p64 = scmp.eq.s32.totalorder %s26, 3
      %p65 = por %p63, %p64
      %p66 = scmp.ne.s32.totalorder %s57, %s58
      %p67 = scmp.eq.s32.totalorder %s26, 0
      %p68 = por %p66, %p67
      %p69 = scmp.ne.s32.totalorder %s57, %s58
      %p70 = scmp.eq.s32.totalorder %s27, 3
      %p71 = por %p69, %p70
      %p73 = scmp.ne.s32.totalorder %s58, %s72
      %p74 = scmp.eq.s32.totalorder %s27, 0
      %p75 = por %p73, %p74
      %s77 = sadd.s32 %s76, 1
      %p80 = scmp.eq.s32.totalorder %s21, 3
      %p81 = scmp.ne.s32.totalorder %s76, %s78
      %p82 = scmp.eq.s32.totalorder %s21, 0
      %p83 = por %p81, %p82
      %p84 = scmp.ne.s32.totalorder %s76, %s78
      %p85 = scmp.eq.s32.totalorder %s26, 3
      %p86 = por %p84, %p85
      %p87 = scmp.ne.s32.totalorder %s78, %s79
      %p88 = scmp.eq.s32.totalorder %s26, 0
      %p89 = por %p87, %p88
      %p90 = scmp.ne.s32.totalorder %s78, %s79
      %p91 = scmp.eq.s32.totalorder %s27, 3
      %p92 = por %p90, %p91
      %p94 = scmp.ne.s32.totalorder %s79, %s93
      %p95 = scmp.eq.s32.totalorder %s27, 0
      %p96 = por %p94, %p95
      %s98 = sadd.s32 %s97, 1
      %p101 = scmp.eq.s32.totalorder %s21, 3
      %p102 = scmp.ne.s32.totalorder %s97, %s99
      %p103 = scmp.eq.s32.totalorder %s21, 0
      %p104 = por %p102, %p103
      %p105 = scmp.ne.s32.totalorder %s97, %s99
      %p106 = scmp.eq.s32.totalorder %s26, 3
      %p107 = por %p105, %p106
      %p108 = scmp.ne.s32.totalorder %s99, %s100
      %p109 = scmp.eq.s32.totalorder %s26, 0
      %p110 = por %p108, %p109
      %p111 = scmp.ne.s32.totalorder %s99, %s100
      %p112 = scmp.eq.s32.totalorder %s27, 3
      %p113 = por %p111, %p112
      %p115 = scmp.ne.s32.totalorder %s100, %s114
      %p116 = scmp.eq.s32.totalorder %s27, 0
      %p117 = por %p115, %p116
      %s119 = sadd.s32 %s118, 1
      %p122 = scmp.eq.s32.totalorder %s21, 3
      %p123 = scmp.ne.s32.totalorder %s118, %s120
      %p124 = scmp.eq.s32.totalorder %s21, 0
      %p125 = por %p123, %p124
      %p126 = scmp.ne.s32.totalorder %s118, %s120
      %p127 = scmp.eq.s32.totalorder %s26, 3
      %p128 = por %p126, %p127
      %p129 = scmp.ne.s32.totalorder %s120, %s121
      %p130 = scmp.eq.s32.totalorder %s26, 0
      %p131 = por %p129, %p130
      %p132 = scmp.ne.s32.totalorder %s120, %s121
      %p133 = scmp.eq.s32.totalorder %s27, 3
      %p134 = por %p132, %p133
      %p136 = scmp.ne.s32.totalorder %s121, %s135
      %p137 = scmp.eq.s32.totalorder %s27, 0
      %p138 = por %p136, %p137
      %s140 = sadd.s32 %s139, 1
      %p143 = scmp.eq.s32.totalorder %s21, 3
      %p144 = scmp.ne.s32.totalorder %s139, %s141
      %p145 = scmp.eq.s32.totalorder %s21, 0
      %p146 = por %p144, %p145
      %p147 = scmp.ne.s32.totalorder %s139, %s141
      %p148 = scmp.eq.s32.totalorder %s26, 3
      %p149 = por %p147, %p148
      %p150 = scmp.ne.s32.totalorder %s141, %s142
      %p151 = scmp.eq.s32.totalorder %s26, 0
      %p152 = por %p150, %p151
      %p153 = scmp.ne.s32.totalorder %s141, %s142
      %p154 = scmp.eq.s32.totalorder %s27, 3
      %p155 = por %p153, %p154
      %p157 = scmp.ne.s32.totalorder %s142, %s156
      %p158 = scmp.eq.s32.totalorder %s27, 0
      %p159 = por %p157, %p158
      %s161 = sadd.s32 %s160, 1
      %p164 = scmp.eq.s32.totalorder %s21, 3
      %p165 = scmp.ne.s32.totalorder %s160, %s162
      %p166 = scmp.eq.s32.totalorder %s21, 0
      %p167 = por %p165, %p166
      %p168 = scmp.ne.s32.totalorder %s160, %s162
      %p169 = scmp.eq.s32.totalorder %s26, 3
      %p170 = por %p168, %p169
      %p171 = scmp.ne.s32.totalorder %s162, %s163
      %p172 = scmp.eq.s32.totalorder %s26, 0
      %p173 = por %p171, %p172
      %p174 = scmp.ne.s32.totalorder %s162, %s163
      %p175 = scmp.eq.s32.totalorder %s27, 3
      %p176 = por %p174, %p175
      %p178 = scmp.ne.s32.totalorder %s163, %s177
      %p179 = scmp.eq.s32.totalorder %s27, 0
      %p180 = por %p178, %p179
      %s181 = ssub.s32 %s21, %s28
      %p182 = scmp.eq.s32.totalorder %s181, 0
      %s184 = sadd.s32 %s183, 1
      %s185 = scalar_select %p182, %s183, %s184
      %p188 = pneg %p182
      %p189 = scmp.eq.s32.totalorder %s21, 3
      %p190 = por %p188, %p189
      %p191 = scmp.ne.s32.totalorder %s183, %s186
      %p192 = scmp.eq.s32.totalorder %s21, 0
      %p193 = por %p191, %p192
      %p194 = scmp.ne.s32.totalorder %s183, %s186
      %p195 = scmp.eq.s32.totalorder %s26, 3
      %p196 = por %p194, %p195
      %p197 = scmp.ne.s32.totalorder %s186, %s187
      %p198 = scmp.eq.s32.totalorder %s26, 0
      %p199 = por %p197, %p198
      %p200 = scmp.ne.s32.totalorder %s186, %s187
      %p201 = scmp.eq.s32.totalorder %s27, 3
      %p202 = por %p200, %p201
      %p204 = scmp.ne.s32.totalorder %s187, %s203
      %p205 = scmp.eq.s32.totalorder %s27, 0
      %p206 = por %p204, %p205
      %p207 = scmp.le.s32.totalorder 1, %s21
      %p208 = scmp.lt.s32.totalorder %s21, 5
      %p209 = pnand %p207, %p208
      %p210 = pneg %p209
      // Predicated region
      $region9: #{tpu_custom_call.1} parent=5 // pred_check
        _
      $region10: #{tpu_custom_call.1} parent=5 // pred_check_branch
        %212 = sbr.rel (%p209) target = $region12
      $region11: #{tpu_custom_call.1} parent=5 // pred_region
        %s213 = ssub.s32 %s21, 1
        // Predicated region
        $region13: #{tpu_custom_call.1} parent=11 // pred_check
          %p214 = pneg %p68
        $region14: #{tpu_custom_call.1} parent=11 // pred_check_branch
          %216 = sbr.rel (%p214) target = $region16
        $region15: #{tpu_custom_call.1} parent=11 // pred_region
          %s218 = ssub.s32 1024, 1024
          %219 = vsyncadd [#allocation6], %s218
          %s220 = sshll.u32 [#allocation5], 4
          %s221 = int_to_ptr.vmem [resolvable:$true] %s220
          %226 = dma.hbm_to_vmem [thread:$0]  %s1, 1024, %s221, [#allocation6], 64, 64, 4
        $region16: #{tpu_custom_call.1} parent=11 // pred_fallthru
          _
        // Predicated region
        $region17: #{tpu_custom_call.1} parent=11 // pred_check
          %p227 = pneg %p89
        $region18: #{tpu_custom_call.1} parent=11 // pred_check_branch
          %229 = sbr.rel (%p227) target = $region20
        $region19: #{tpu_custom_call.1} parent=11 // pred_region
          _
        $region20: #{tpu_custom_call.1} parent=11 // pred_fallthru
          _
        // Predicated region
        $region21: #{tpu_custom_call.1} parent=11 // pred_check
          %p230 = pneg %p110
        $region22: #{tpu_custom_call.1} parent=11 // pred_check_branch
          %232 = sbr.rel (%p230) target = $region24
        $region23: #{tpu_custom_call.1} parent=11 // pred_region
          %s234 = ssub.s32 1024, 1024
          %235 = vsyncadd [#allocation6], %s234
          %s236 = sshll.u32 [#allocation7], 4
          %s237 = int_to_ptr.vmem [resolvable:$true] %s236
          %242 = dma.hbm_to_vmem [thread:$0]  %s3, 1024, %s237, [#allocation6], 64, 64, 4
        $region24: #{tpu_custom_call.1} parent=11 // pred_fallthru
          _
        // Predicated region
        $region25: #{tpu_custom_call.1} parent=11 // pred_check
          %p243 = pneg %p131
        $region26: #{tpu_custom_call.1} parent=11 // pred_check_branch
          %245 = sbr.rel (%p243) target = $region28
        $region27: #{tpu_custom_call.1} parent=11 // pred_region
          _
        $region28: #{tpu_custom_call.1} parent=11 // pred_fallthru
          _
        // Predicated region
        $region29: #{tpu_custom_call.1} parent=11 // pred_check
          %p246 = pneg %p152
        $region30: #{tpu_custom_call.1} parent=11 // pred_check_branch
          %248 = sbr.rel (%p246) target = $region32
        $region31: #{tpu_custom_call.1} parent=11 // pred_region
          %s250 = ssub.s32 2048, 2048
          %251 = vsyncadd [#allocation9], %s250
          %s252 = sshll.u32 [#allocation8], 4
          %s253 = int_to_ptr.vmem [resolvable:$true] %s252
          %258 = dma.hbm_to_vmem [thread:$0]  %s5, 2048, %s253, [#allocation9], 128, 128, 8
        $region32: #{tpu_custom_call.1} parent=11 // pred_fallthru
          _
        // Predicated region
        $region33: #{tpu_custom_call.1} parent=11 // pred_check
          %p259 = pneg %p173
        $region34: #{tpu_custom_call.1} parent=11 // pred_check_branch
          %261 = sbr.rel (%p259) target = $region36
        $region35: #{tpu_custom_call.1} parent=11 // pred_region
          _
        $region36: #{tpu_custom_call.1} parent=11 // pred_fallthru
          _
      $region12: #{tpu_custom_call.1} parent=5 // pred_fallthru
        _
      %p262 = scmp.lt.s32.totalorder %s21, 4
      // Predicated region
      $region37: #{tpu_custom_call.1} parent=5 // pred_check
        %p263 = pneg %p262
      $region38: #{tpu_custom_call.1} parent=5 // pred_check_branch
        %265 = sbr.rel (%p263) target = $region40
      $region39: #{tpu_custom_call.1} parent=5 // pred_region
        // Predicated region
        $region41: #{tpu_custom_call.1} parent=39 // pred_check
          %p266 = pneg %p41
        $region42: #{tpu_custom_call.1} parent=39 // pred_check_branch
          %268 = sbr.rel (%p266) target = $region44
        $region43: #{tpu_custom_call.1} parent=39 // pred_region
          %s269 = sand.u32 %s31, 1
          %s270 = scalar_lea.sflag [#allocation3], %s269
          %s271 = sand.u32 %s31, 1
          %s272 = smul.addr %s271, 64
          %s273 = scalar_lea.vmem [#allocation2], %s272
          %s274 = smul.u32 16, %s21
          %s276 = ssub.s32 1024, 1024
          %277 = vsyncadd %s270, %s276
          %s278 = smul.addr %s274, 64
          %s279 = scalar_lea.hbm %s0, %s278
          %s280 = sshll.u32 %s273, 4
          %s281 = int_to_ptr.vmem [resolvable:$true] %s280
          %286 = dma.hbm_to_vmem [thread:$0]  %s279, 1024, %s281, %s270, 64, 64, 4
        $region44: #{tpu_custom_call.1} parent=39 // pred_fallthru
          _
      $region40: #{tpu_custom_call.1} parent=5 // pred_fallthru
        _
      %p287 = scmp.le.s32.totalorder 1, %s21
      %p288 = scmp.lt.s32.totalorder %s21, 5
      %p289 = pnand %p287, %p288
      %p290 = pneg %p289
      // Predicated region
      $region45: #{tpu_custom_call.1} parent=5 // pred_check
        _
      $region46: #{tpu_custom_call.1} parent=5 // pred_check_branch
        %292 = sbr.rel (%p289) target = $region48
      $region47: #{tpu_custom_call.1} parent=5 // pred_region
        %s293 = ssub.s32 %s21, 1
        %s294 = sand.u32 %s34, 1
        %s295 = scalar_lea.sflag [#allocation3], %s294
        %s296 = sand.u32 %s34, 1
        %s297 = smul.addr %s296, 64
        %s298 = scalar_lea.vmem [#allocation2], %s297
        // Predicated region
        $region49: #{tpu_custom_call.1} parent=47 // pred_check
          %p299 = pneg %p47
        $region50: #{tpu_custom_call.1} parent=47 // pred_check_branch
          %301 = sbr.rel (%p299) target = $region52
        $region51: #{tpu_custom_call.1} parent=47 // pred_region
          %302 = dma.done %s295, 1024
        $region52: #{tpu_custom_call.1} parent=47 // pred_fallthru
          _
        // Predicated region
        $region53: #{tpu_custom_call.1} parent=47 // pred_check
          %p303 = pneg %p68
        $region54: #{tpu_custom_call.1} parent=47 // pred_check_branch
          %305 = sbr.rel (%p303) target = $region56
        $region55: #{tpu_custom_call.1} parent=47 // pred_region
          %306 = dma.done [#allocation6], 1024
        $region56: #{tpu_custom_call.1} parent=47 // pred_fallthru
          _
        // Predicated region
        $region57: #{tpu_custom_call.1} parent=47 // pred_check
          %p307 = pneg %p110
        $region58: #{tpu_custom_call.1} parent=47 // pred_check_branch
          %309 = sbr.rel (%p307) target = $region60
        $region59: #{tpu_custom_call.1} parent=47 // pred_region
          %310 = dma.done [#allocation6], 1024
        $region60: #{tpu_custom_call.1} parent=47 // pred_fallthru
          _
        // Predicated region
        $region61: #{tpu_custom_call.1} parent=47 // pred_check
          %p311 = pneg %p152
        $region62: #{tpu_custom_call.1} parent=47 // pred_check_branch
          %313 = sbr.rel (%p311) target = $region64
        $region63: #{tpu_custom_call.1} parent=47 // pred_region
          %314 = dma.done [#allocation9], 2048
        $region64: #{tpu_custom_call.1} parent=47 // pred_fallthru
          _
        %s315 = sand.u32 %s34, 1
        %s316 = scalar_lea.sflag [#allocation3], %s315
        %s317 = sand.u32 %s34, 1
        %s318 = smul.addr %s317, 64
        %s319 = scalar_lea.vmem [#allocation2], %s318
        %p320 = pneg %p47
        %p321 = pneg %p44
        %p322 = pneg %p68
        %p323 = pneg %p65
        %p324 = pneg %p89
        %p325 = pneg %p86
        %p326 = pneg %p110
        %p327 = pneg %p107
        %p328 = pneg %p131
        %p329 = pneg %p128
        %p330 = pneg %p152
        %p331 = pneg %p149
        %p332 = pneg %p173
        %p333 = pneg %p170
        %p334 = pneg %p199
        %p335 = pneg %p196
        %s336 = sand.u32 %s186, 1
        %s337 = scalar_lea.sflag [#allocation4], %s336
        %s338 = sand.u32 %s186, 1
        %s339 = smul.addr %s338, 256
        %s340 = scalar_lea.vmem [#allocation10], %s339
        %s341 = smul.u32 16, %s26
        %s342 = smul.u32 16, %s26
        %v344 = vld [vmem:[%s298] sm:$0xf]
        %v345 = vld [vmem:[%s298 + $0x4] sm:$0xf]
        %v346 = vld [vmem:[%s298 + $0x8] sm:$0xf]
        %v347 = vld [vmem:[%s298 + $0xc] sm:$0xf]
        %v348 = vld [vmem:[%s298 + $0x10] sm:$0xf]
        %v349 = vld [vmem:[%s298 + $0x14] sm:$0xf]
        %v350 = vld [vmem:[%s298 + $0x18] sm:$0xf]
        %v351 = vld [vmem:[%s298 + $0x1c] sm:$0xf]
        %v352 = vld [vmem:[%s298 + $0x20] sm:$0xf]
        %v353 = vld [vmem:[%s298 + $0x24] sm:$0xf]
        %v354 = vld [vmem:[%s298 + $0x28] sm:$0xf]
        %v355 = vld [vmem:[%s298 + $0x2c] sm:$0xf]
        %v356 = vld [vmem:[%s298 + $0x30] sm:$0xf]
        %v357 = vld [vmem:[%s298 + $0x34] sm:$0xf]
        %v358 = vld [vmem:[%s298 + $0x38] sm:$0xf]
        %v359 = vld [vmem:[%s298 + $0x3c] sm:$0xf]
        %v360 = vld [vmem:[#allocation5] sm:$0xf]
        %v361 = vld [vmem:[#allocation5 + $0x4] sm:$0xf]
        %v362 = vld [vmem:[#allocation5 + $0x8] sm:$0xf]
        %v363 = vld [vmem:[#allocation5 + $0xc] sm:$0xf]
        %v364 = vld [vmem:[#allocation5 + $0x10] sm:$0xf]
        %v365 = vld [vmem:[#allocation5 + $0x14] sm:$0xf]
        %v366 = vld [vmem:[#allocation5 + $0x18] sm:$0xf]
        %v367 = vld [vmem:[#allocation5 + $0x1c] sm:$0xf]
        %v368 = vld [vmem:[#allocation5 + $0x20] sm:$0xf]
        %v369 = vld [vmem:[#allocation5 + $0x24] sm:$0xf]
        %v370 = vld [vmem:[#allocation5 + $0x28] sm:$0xf]
        %v371 = vld [vmem:[#allocation5 + $0x2c] sm:$0xf]
        %v372 = vld [vmem:[#allocation5 + $0x30] sm:$0xf]
        %v373 = vld [vmem:[#allocation5 + $0x34] sm:$0xf]
        %v374 = vld [vmem:[#allocation5 + $0x38] sm:$0xf]
        %v375 = vld [vmem:[#allocation5 + $0x3c] sm:$0xf]
        %v376 = vld [vmem:[%s2] sm:$0x1]
        %v378 = vlaneseq
        %v379 = vshrl.u32 %v378, 7
        %v380 = vsub.s32 0, %v379
        %v381 = vrot.slane %v376, %v380
        %v399 = vunpack.c.l.b16 %v344
        %v400 = vunpack.c.l.b16 %v345
        %v401 = vunpack.c.l.b16 %v346
        %v402 = vunpack.c.l.b16 %v347
        %v403 = vunpack.c.l.b16 %v348
        %v404 = vunpack.c.l.b16 %v349
        %v405 = vunpack.c.l.b16 %v350
        %v406 = vunpack.c.l.b16 %v351
        %v407 = vunpack.c.l.b16 %v352
        %v408 = vunpack.c.l.b16 %v353
        %v409 = vunpack.c.l.b16 %v354
        %v410 = vunpack.c.l.b16 %v355
        %v411 = vunpack.c.l.b16 %v356
        %v412 = vunpack.c.l.b16 %v357
        %v413 = vunpack.c.l.b16 %v358
        %v414 = vunpack.c.l.b16 %v359
        %v415 = vpack.c.b16 %v400, %v399
        %v416 = vpack.c.b16 %v402, %v401
        %v417 = vpack.c.b16 %v404, %v403
        %v418 = vpack.c.b16 %v406, %v405
        %v419 = vpack.c.b16 %v408, %v407
        %v420 = vpack.c.b16 %v410, %v409
        %v421 = vpack.c.b16 %v412, %v411
        %v422 = vpack.c.b16 %v414, %v413
        %v447 = vunpack.c.l.b16 %v360
        %v448 = vunpack.c.l.b16 %v361
        %v449 = vunpack.c.l.b16 %v362
        %v450 = vunpack.c.l.b16 %v363
        %v451 = vunpack.c.l.b16 %v364
        %v452 = vunpack.c.l.b16 %v365
        %v453 = vunpack.c.l.b16 %v366
        %v454 = vunpack.c.l.b16 %v367
        %v455 = vunpack.c.l.b16 %v368
        %v456 = vunpack.c.l.b16 %v369
        %v457 = vunpack.c.l.b16 %v370
        %v458 = vunpack.c.l.b16 %v371
        %v459 = vunpack.c.l.b16 %v372
        %v460 = vunpack.c.l.b16 %v373
        %v461 = vunpack.c.l.b16 %v374
        %v462 = vunpack.c.l.b16 %v375
        %v463 = vpack.c.b16 %v448, %v447
        %v464 = vpack.c.b16 %v450, %v449
        %v465 = vpack.c.b16 %v452, %v451
        %v466 = vpack.c.b16 %v454, %v453
        %v467 = vpack.c.b16 %v456, %v455
        %v468 = vpack.c.b16 %v458, %v457
        %v469 = vpack.c.b16 %v460, %v459
        %v470 = vpack.c.b16 %v462, %v461
        %479 = vmatprep.subr.bf16.mxu0 0
        %480 = vmatpush1.bf16.msra.mxu0 %v470
        %481 = vmatprep.subr.bf16.mxu0 0
        %482 = vmatpush1.bf16.msra.mxu0 %v469
        %483 = vmatprep.subr.bf16.mxu0 0
        %484 = vmatpush1.bf16.msra.mxu0 %v468
        %485 = vmatprep.subr.bf16.mxu0 0
        %486 = vmatpush1.bf16.msra.mxu0 %v467
        %487 = vmatprep.subr.bf16.mxu0 0
        %488 = vmatpush1.bf16.msra.mxu0 %v466
        %489 = vmatprep.subr.bf16.mxu0 0
        %490 = vmatpush1.bf16.msra.mxu0 %v465
        %491 = vmatprep.subr.bf16.mxu0 0
        %492 = vmatpush1.bf16.msra.mxu0 %v464
        %493 = vmatprep.subr.bf16.mxu0 0
        %494 = vmatpush1.bf16.msra.mxu0 %v463
        %495 = vmatprep.subr.bf16.mxu0 0
        %496 = vmatpush2.bf16.msra.mxu0 0
        %497 = vmatprep.subr.bf16.mxu0 0
        %498 = vmatpush2.bf16.msra.mxu0 0
        %499 = vmatprep.subr.bf16.mxu0 0
        %500 = vmatpush2.bf16.msra.mxu0 0
        %501 = vmatprep.subr.bf16.mxu0 0
        %502 = vmatpush2.bf16.msra.mxu0 0
        %503 = vmatprep.subr.bf16.mxu0 0
        %504 = vmatpush2.bf16.msra.mxu0 0
        %505 = vmatprep.subr.bf16.mxu0 0
        %506 = vmatpush2.bf16.msra.mxu0 0
        %507 = vmatprep.subr.bf16.mxu0 0
        %508 = vmatpush2.bf16.msra.mxu0 0
        %509 = vmatprep.subr.bf16.mxu0 0
        %510 = vmatpush2.bf16.msra.mxu0 0
        %511 = vmatprep.mubr.bf16.mxu0 0
        %512 = vmatmul.mubr.bf16.gmra.mxu0 %v415
        %v513 = vpop.f32.mrf.mxu0
        %v514 = vadd.f32 %v381, %v513
        %v515 = vpop.f32.mrf.mxu0
        %v516 = vpop.f32.mrf.mxu0
        %v517 = vadd.f32 %v381, %v516
        %v518 = vpop.f32.mrf.mxu0
        %519 = vmatprep.mubr.bf16.mxu0 0
        %520 = vmatmul.mubr.bf16.gmra.mxu0 %v416
        %v521 = vpop.f32.mrf.mxu0
        %v522 = vadd.f32 %v381, %v521
        %v523 = vpop.f32.mrf.mxu0
        %v524 = vpop.f32.mrf.mxu0
        %v525 = vadd.f32 %v381, %v524
        %v526 = vpop.f32.mrf.mxu0
        %527 = vmatprep.mubr.bf16.mxu0 0
        %528 = vmatmul.mubr.bf16.gmra.mxu0 %v417
        %v529 = vpop.f32.mrf.mxu0
        %v530 = vadd.f32 %v381, %v529
        %v531 = vpop.f32.mrf.mxu0
        %v532 = vpop.f32.mrf.mxu0
        %v533 = vadd.f32 %v381, %v532
        %v534 = vpop.f32.mrf.mxu0
        %535 = vmatprep.mubr.bf16.mxu0 0
        %536 = vmatmul.mubr.bf16.gmra.mxu0 %v418
        %v537 = vpop.f32.mrf.mxu0
        %v538 = vadd.f32 %v381, %v537
        %v539 = vpop.f32.mrf.mxu0
        %v540 = vpop.f32.mrf.mxu0
        %v541 = vadd.f32 %v381, %v540
        %v542 = vpop.f32.mrf.mxu0
        %543 = vmatprep.mubr.bf16.mxu0 0
        %544 = vmatmul.mubr.bf16.gmra.mxu0 %v419
        %v545 = vpop.f32.mrf.mxu0
        %v546 = vadd.f32 %v381, %v545
        %v547 = vpop.f32.mrf.mxu0
        %v548 = vpop.f32.mrf.mxu0
        %v549 = vadd.f32 %v381, %v548
        %v550 = vpop.f32.mrf.mxu0
        %551 = vmatprep.mubr.bf16.mxu0 0
        %552 = vmatmul.mubr.bf16.gmra.mxu0 %v420
        %v553 = vpop.f32.mrf.mxu0
        %v554 = vadd.f32 %v381, %v553
        %v555 = vpop.f32.mrf.mxu0
        %v556 = vpop.f32.mrf.mxu0
        %v557 = vadd.f32 %v381, %v556
        %v558 = vpop.f32.mrf.mxu0
        %559 = vmatprep.mubr.bf16.mxu0 0
        %560 = vmatmul.mubr.bf16.gmra.mxu0 %v421
        %v561 = vpop.f32.mrf.mxu0
        %v562 = vadd.f32 %v381, %v561
        %v563 = vpop.f32.mrf.mxu0
        %v564 = vpop.f32.mrf.mxu0
        %v565 = vadd.f32 %v381, %v564
        %v566 = vpop.f32.mrf.mxu0
        %567 = vmatprep.mubr.bf16.mxu0 0
        %568 = vmatmul.mubr.bf16.gmra.mxu0 %v422
        %v569 = vpop.f32.mrf.mxu0
        %v570 = vadd.f32 %v381, %v569
        %v571 = vpop.f32.mrf.mxu0
        %v572 = vpop.f32.mrf.mxu0
        %v573 = vadd.f32 %v381, %v572
        %v574 = vpop.f32.mrf.mxu0
        %575 = vdwg.mxu0
        %vm576 = vcmp.gt.f32.partialorder %v514, 0.0
        %vm577 = vcmp.gt.f32.partialorder %v517, 0.0
        %vm578 = vcmp.gt.f32.partialorder %v522, 0.0
        %vm579 = vcmp.gt.f32.partialorder %v525, 0.0
        %vm580 = vcmp.gt.f32.partialorder %v530, 0.0
        %vm581 = vcmp.gt.f32.partialorder %v533, 0.0
        %vm582 = vcmp.gt.f32.partialorder %v538, 0.0
        %vm583 = vcmp.gt.f32.partialorder %v541, 0.0
        %vm584 = vcmp.gt.f32.partialorder %v546, 0.0
        %vm585 = vcmp.gt.f32.partialorder %v549, 0.0
        %vm586 = vcmp.gt.f32.partialorder %v554, 0.0
        %vm587 = vcmp.gt.f32.partialorder %v557, 0.0
        %vm588 = vcmp.gt.f32.partialorder %v562, 0.0
        %vm589 = vcmp.gt.f32.partialorder %v565, 0.0
        %vm590 = vcmp.gt.f32.partialorder %v570, 0.0
        %vm591 = vcmp.gt.f32.partialorder %v573, 0.0
        %v592 = vmul.f32 %v514, 0.2
        %v593 = vmul.f32 %v517, 0.2
        %v594 = vmul.f32 %v522, 0.2
        %v595 = vmul.f32 %v525, 0.2
        %v596 = vmul.f32 %v530, 0.2
        %v597 = vmul.f32 %v533, 0.2
        %v598 = vmul.f32 %v538, 0.2
        %v599 = vmul.f32 %v541, 0.2
        %v600 = vmul.f32 %v546, 0.2
        %v601 = vmul.f32 %v549, 0.2
        %v602 = vmul.f32 %v554, 0.2
        %v603 = vmul.f32 %v557, 0.2
        %v604 = vmul.f32 %v562, 0.2
        %v605 = vmul.f32 %v565, 0.2
        %v606 = vmul.f32 %v570, 0.2
        %v607 = vmul.f32 %v573, 0.2
        %v608 = vsel %vm576, %v514, %v592
        %v609 = vsel %vm577, %v517, %v593
        %v610 = vsel %vm578, %v522, %v594
        %v611 = vsel %vm579, %v525, %v595
        %v612 = vsel %vm580, %v530, %v596
        %v613 = vsel %vm581, %v533, %v597
        %v614 = vsel %vm582, %v538, %v598
        %v615 = vsel %vm583, %v541, %v599
        %v616 = vsel %vm584, %v546, %v600
        %v617 = vsel %vm585, %v549, %v601
        %v618 = vsel %vm586, %v554, %v602
        %v619 = vsel %vm587, %v557, %v603
        %v620 = vsel %vm588, %v562, %v604
        %v621 = vsel %vm589, %v565, %v605
        %v622 = vsel %vm590, %v570, %v606
        %v623 = vsel %vm591, %v573, %v607
        %v624 = vpack.c.bf16 %v609, %v608
        %v625 = vpack.c.bf16 %v611, %v610
        %v626 = vpack.c.bf16 %v613, %v612
        %v627 = vpack.c.bf16 %v615, %v614
        %v628 = vpack.c.bf16 %v617, %v616
        %v629 = vpack.c.bf16 %v619, %v618
        %v630 = vpack.c.bf16 %v621, %v620
        %v631 = vpack.c.bf16 %v623, %v622
        %v632 = vld [vmem:[#allocation7] sm:$0xf]
        %v633 = vld [vmem:[#allocation7 + $0x4] sm:$0xf]
        %v634 = vld [vmem:[#allocation7 + $0x8] sm:$0xf]
        %v635 = vld [vmem:[#allocation7 + $0xc] sm:$0xf]
        %v636 = vld [vmem:[#allocation7 + $0x10] sm:$0xf]
        %v637 = vld [vmem:[#allocation7 + $0x14] sm:$0xf]
        %v638 = vld [vmem:[#allocation7 + $0x18] sm:$0xf]
        %v639 = vld [vmem:[#allocation7 + $0x1c] sm:$0xf]
        %v640 = vld [vmem:[#allocation7 + $0x20] sm:$0xf]
        %v641 = vld [vmem:[#allocation7 + $0x24] sm:$0xf]
        %v642 = vld [vmem:[#allocation7 + $0x28] sm:$0xf]
        %v643 = vld [vmem:[#allocation7 + $0x2c] sm:$0xf]
        %v644 = vld [vmem:[#allocation7 + $0x30] sm:$0xf]
        %v645 = vld [vmem:[#allocation7 + $0x34] sm:$0xf]
        %v646 = vld [vmem:[#allocation7 + $0x38] sm:$0xf]
        %v647 = vld [vmem:[#allocation7 + $0x3c] sm:$0xf]
        %v648 = vld [vmem:[%s4] sm:$0x1]
        %v650 = vlaneseq
        %v651 = vshrl.u32 %v650, 7
        %v652 = vsub.s32 0, %v651
        %v653 = vrot.slane %v648, %v652
        %v671 = vunpack.c.l.b16 %v632
        %v672 = vunpack.c.l.b16 %v633
        %v673 = vunpack.c.l.b16 %v634
        %v674 = vunpack.c.l.b16 %v635
        %v675 = vunpack.c.l.b16 %v636
        %v676 = vunpack.c.l.b16 %v637
        %v677 = vunpack.c.l.b16 %v638
        %v678 = vunpack.c.l.b16 %v639
        %v679 = vunpack.c.l.b16 %v640
        %v680 = vunpack.c.l.b16 %v641
        %v681 = vunpack.c.l.b16 %v642
        %v682 = vunpack.c.l.b16 %v643
        %v683 = vunpack.c.l.b16 %v644
        %v684 = vunpack.c.l.b16 %v645
        %v685 = vunpack.c.l.b16 %v646
        %v686 = vunpack.c.l.b16 %v647
        %v687 = vpack.c.b16 %v672, %v671
        %v688 = vpack.c.b16 %v674, %v673
        %v689 = vpack.c.b16 %v676, %v675
        %v690 = vpack.c.b16 %v678, %v677
        %v691 = vpack.c.b16 %v680, %v679
        %v692 = vpack.c.b16 %v682, %v681
        %v693 = vpack.c.b16 %v684, %v683
        %v694 = vpack.c.b16 %v686, %v685
        %703 = vmatprep.subr.bf16.mxu0 0
        %704 = vmatpush1.bf16.msra.mxu0 %v694
        %705 = vmatprep.subr.bf16.mxu0 0
        %706 = vmatpush1.bf16.msra.mxu0 %v693
        %707 = vmatprep.subr.bf16.mxu0 0
        %708 = vmatpush1.bf16.msra.mxu0 %v692
        %709 = vmatprep.subr.bf16.mxu0 0
        %710 = vmatpush1.bf16.msra.mxu0 %v691
        %711 = vmatprep.subr.bf16.mxu0 0
        %712 = vmatpush1.bf16.msra.mxu0 %v690
        %713 = vmatprep.subr.bf16.mxu0 0
        %714 = vmatpush1.bf16.msra.mxu0 %v689
        %715 = vmatprep.subr.bf16.mxu0 0
        %716 = vmatpush1.bf16.msra.mxu0 %v688
        %717 = vmatprep.subr.bf16.mxu0 0
        %718 = vmatpush1.bf16.msra.mxu0 %v687
        %719 = vmatprep.subr.bf16.mxu0 0
        %720 = vmatpush2.bf16.msra.mxu0 0
        %721 = vmatprep.subr.bf16.mxu0 0
        %722 = vmatpush2.bf16.msra.mxu0 0
        %723 = vmatprep.subr.bf16.mxu0 0
        %724 = vmatpush2.bf16.msra.mxu0 0
        %725 = vmatprep.subr.bf16.mxu0 0
        %726 = vmatpush2.bf16.msra.mxu0 0
        %727 = vmatprep.subr.bf16.mxu0 0
        %728 = vmatpush2.bf16.msra.mxu0 0
        %729 = vmatprep.subr.bf16.mxu0 0
        %730 = vmatpush2.bf16.msra.mxu0 0
        %731 = vmatprep.subr.bf16.mxu0 0
        %732 = vmatpush2.bf16.msra.mxu0 0
        %733 = vmatprep.subr.bf16.mxu0 0
        %734 = vmatpush2.bf16.msra.mxu0 0
        %735 = vmatprep.mubr.bf16.mxu0 0
        %736 = vmatmul.mubr.bf16.gmra.mxu0 %v624
        %v737 = vpop.f32.mrf.mxu0
        %v738 = vadd.f32 %v653, %v737
        %v739 = vpop.f32.mrf.mxu0
        %v740 = vpop.f32.mrf.mxu0
        %v741 = vadd.f32 %v653, %v740
        %v742 = vpop.f32.mrf.mxu0
        %743 = vmatprep.mubr.bf16.mxu0 0
        %744 = vmatmul.mubr.bf16.gmra.mxu0 %v625
        %v745 = vpop.f32.mrf.mxu0
        %v746 = vadd.f32 %v653, %v745
        %v747 = vpop.f32.mrf.mxu0
        %v748 = vpop.f32.mrf.mxu0
        %v749 = vadd.f32 %v653, %v748
        %v750 = vpop.f32.mrf.mxu0
        %751 = vmatprep.mubr.bf16.mxu0 0
        %752 = vmatmul.mubr.bf16.gmra.mxu0 %v626
        %v753 = vpop.f32.mrf.mxu0
        %v754 = vadd.f32 %v653, %v753
        %v755 = vpop.f32.mrf.mxu0
        %v756 = vpop.f32.mrf.mxu0
        %v757 = vadd.f32 %v653, %v756
        %v758 = vpop.f32.mrf.mxu0
        %759 = vmatprep.mubr.bf16.mxu0 0
        %760 = vmatmul.mubr.bf16.gmra.mxu0 %v627
        %v761 = vpop.f32.mrf.mxu0
        %v762 = vadd.f32 %v653, %v761
        %v763 = vpop.f32.mrf.mxu0
        %v764 = vpop.f32.mrf.mxu0
        %v765 = vadd.f32 %v653, %v764
        %v766 = vpop.f32.mrf.mxu0
        %767 = vmatprep.mubr.bf16.mxu0 0
        %768 = vmatmul.mubr.bf16.gmra.mxu0 %v628
        %v769 = vpop.f32.mrf.mxu0
        %v770 = vadd.f32 %v653, %v769
        %v771 = vpop.f32.mrf.mxu0
        %v772 = vpop.f32.mrf.mxu0
        %v773 = vadd.f32 %v653, %v772
        %v774 = vpop.f32.mrf.mxu0
        %775 = vmatprep.mubr.bf16.mxu0 0
        %776 = vmatmul.mubr.bf16.gmra.mxu0 %v629
        %v777 = vpop.f32.mrf.mxu0
        %v778 = vadd.f32 %v653, %v777
        %v779 = vpop.f32.mrf.mxu0
        %v780 = vpop.f32.mrf.mxu0
        %v781 = vadd.f32 %v653, %v780
        %v782 = vpop.f32.mrf.mxu0
        %783 = vmatprep.mubr.bf16.mxu0 0
        %784 = vmatmul.mubr.bf16.gmra.mxu0 %v630
        %v785 = vpop.f32.mrf.mxu0
        %v786 = vadd.f32 %v653, %v785
        %v787 = vpop.f32.mrf.mxu0
        %v788 = vpop.f32.mrf.mxu0
        %v789 = vadd.f32 %v653, %v788
        %v790 = vpop.f32.mrf.mxu0
        %791 = vmatprep.mubr.bf16.mxu0 0
        %792 = vmatmul.mubr.bf16.gmra.mxu0 %v631
        %v793 = vpop.f32.mrf.mxu0
        %v794 = vadd.f32 %v653, %v793
        %v795 = vpop.f32.mrf.mxu0
        %v796 = vpop.f32.mrf.mxu0
        %v797 = vadd.f32 %v653, %v796
        %v798 = vpop.f32.mrf.mxu0
        %799 = vdwg.mxu0
        %vm800 = vcmp.gt.f32.partialorder %v738, 0.0
        %vm801 = vcmp.gt.f32.partialorder %v741, 0.0
        %vm802 = vcmp.gt.f32.partialorder %v746, 0.0
        %vm803 = vcmp.gt.f32.partialorder %v749, 0.0
        %vm804 = vcmp.gt.f32.partialorder %v754, 0.0
        %vm805 = vcmp.gt.f32.partialorder %v757, 0.0
        %vm806 = vcmp.gt.f32.partialorder %v762, 0.0
        %vm807 = vcmp.gt.f32.partialorder %v765, 0.0
        %vm808 = vcmp.gt.f32.partialorder %v770, 0.0
        %vm809 = vcmp.gt.f32.partialorder %v773, 0.0
        %vm810 = vcmp.gt.f32.partialorder %v778, 0.0
        %vm811 = vcmp.gt.f32.partialorder %v781, 0.0
        %vm812 = vcmp.gt.f32.partialorder %v786, 0.0
        %vm813 = vcmp.gt.f32.partialorder %v789, 0.0
        %vm814 = vcmp.gt.f32.partialorder %v794, 0.0
        %vm815 = vcmp.gt.f32.partialorder %v797, 0.0
        %v816 = vmul.f32 %v738, 0.2
        %v817 = vmul.f32 %v741, 0.2
        %v818 = vmul.f32 %v746, 0.2
        %v819 = vmul.f32 %v749, 0.2
        %v820 = vmul.f32 %v754, 0.2
        %v821 = vmul.f32 %v757, 0.2
        %v822 = vmul.f32 %v762, 0.2
        %v823 = vmul.f32 %v765, 0.2
        %v824 = vmul.f32 %v770, 0.2
        %v825 = vmul.f32 %v773, 0.2
        %v826 = vmul.f32 %v778, 0.2
        %v827 = vmul.f32 %v781, 0.2
        %v828 = vmul.f32 %v786, 0.2
        %v829 = vmul.f32 %v789, 0.2
        %v830 = vmul.f32 %v794, 0.2
        %v831 = vmul.f32 %v797, 0.2
        %v832 = vsel %vm800, %v738, %v816
        %v833 = vsel %vm801, %v741, %v817
        %v834 = vsel %vm802, %v746, %v818
        %v835 = vsel %vm803, %v749, %v819
        %v836 = vsel %vm804, %v754, %v820
        %v837 = vsel %vm805, %v757, %v821
        %v838 = vsel %vm806, %v762, %v822
        %v839 = vsel %vm807, %v765, %v823
        %v840 = vsel %vm808, %v770, %v824
        %v841 = vsel %vm809, %v773, %v825
        %v842 = vsel %vm810, %v778, %v826
        %v843 = vsel %vm811, %v781, %v827
        %v844 = vsel %vm812, %v786, %v828
        %v845 = vsel %vm813, %v789, %v829
        %v846 = vsel %vm814, %v794, %v830
        %v847 = vsel %vm815, %v797, %v831
        %v848 = vpack.c.bf16 %v833, %v832
        %v849 = vpack.c.bf16 %v835, %v834
        %v850 = vpack.c.bf16 %v837, %v836
        %v851 = vpack.c.bf16 %v839, %v838
        %v852 = vpack.c.bf16 %v841, %v840
        %v853 = vpack.c.bf16 %v843, %v842
        %v854 = vpack.c.bf16 %v845, %v844
        %v855 = vpack.c.bf16 %v847, %v846
        %v856 = vld [vmem:[#allocation8] sm:$0xff]
        %v857 = vld [vmem:[#allocation8 + $0x8] sm:$0xff]
        %v858 = vld [vmem:[#allocation8 + $0x10] sm:$0xff]
        %v859 = vld [vmem:[#allocation8 + $0x18] sm:$0xff]
        %v860 = vld [vmem:[#allocation8 + $0x20] sm:$0xff]
        %v861 = vld [vmem:[#allocation8 + $0x28] sm:$0xff]
        %v862 = vld [vmem:[#allocation8 + $0x30] sm:$0xff]
        %v863 = vld [vmem:[#allocation8 + $0x38] sm:$0xff]
        %v864 = vld [vmem:[#allocation8 + $0x40] sm:$0xff]
        %v865 = vld [vmem:[#allocation8 + $0x48] sm:$0xff]
        %v866 = vld [vmem:[#allocation8 + $0x50] sm:$0xff]
        %v867 = vld [vmem:[#allocation8 + $0x58] sm:$0xff]
        %v868 = vld [vmem:[#allocation8 + $0x60] sm:$0xff]
        %v869 = vld [vmem:[#allocation8 + $0x68] sm:$0xff]
        %v870 = vld [vmem:[#allocation8 + $0x70] sm:$0xff]
        %v871 = vld [vmem:[#allocation8 + $0x78] sm:$0xff]
        %v872 = vld [vmem:[%s6] sm:$0x3]
        %v874 = vlaneseq
        %v875 = vshrl.u32 %v874, 7
        %v876 = vsub.s32 0, %v875
        %v877 = vrot.slane %v872, %v876
        %v878 = vlaneseq
        %v879 = vshrl.u32 %v878, 7
        %v880 = vsub.s32 1, %v879
        %v881 = vrot.slane %v872, %v880
        %v900 = vunpack.c.l.b16 %v856
        %v901 = vunpack.c.h.b16 %v856
        %v902 = vunpack.c.l.b16 %v857
        %v903 = vunpack.c.h.b16 %v857
        %v904 = vunpack.c.l.b16 %v858
        %v905 = vunpack.c.h.b16 %v858
        %v906 = vunpack.c.l.b16 %v859
        %v907 = vunpack.c.h.b16 %v859
        %v908 = vunpack.c.l.b16 %v860
        %v909 = vunpack.c.h.b16 %v860
        %v910 = vunpack.c.l.b16 %v861
        %v911 = vunpack.c.h.b16 %v861
        %v912 = vunpack.c.l.b16 %v862
        %v913 = vunpack.c.h.b16 %v862
        %v914 = vunpack.c.l.b16 %v863
        %v915 = vunpack.c.h.b16 %v863
        %v916 = vunpack.c.l.b16 %v864
        %v917 = vunpack.c.h.b16 %v864
        %v918 = vunpack.c.l.b16 %v865
        %v919 = vunpack.c.h.b16 %v865
        %v920 = vunpack.c.l.b16 %v866
        %v921 = vunpack.c.h.b16 %v866
        %v922 = vunpack.c.l.b16 %v867
        %v923 = vunpack.c.h.b16 %v867
        %v924 = vunpack.c.l.b16 %v868
        %v925 = vunpack.c.h.b16 %v868
        %v926 = vunpack.c.l.b16 %v869
        %v927 = vunpack.c.h.b16 %v869
        %v928 = vunpack.c.l.b16 %v870
        %v929 = vunpack.c.h.b16 %v870
        %v930 = vunpack.c.l.b16 %v871
        %v931 = vunpack.c.h.b16 %v871
        %v932 = vpack.c.b16 %v902, %v900
        %v933 = vpack.c.b16 %v903, %v901
        %v934 = vpack.c.b16 %v906, %v904
        %v935 = vpack.c.b16 %v907, %v905
        %v936 = vpack.c.b16 %v910, %v908
        %v937 = vpack.c.b16 %v911, %v909
        %v938 = vpack.c.b16 %v914, %v912
        %v939 = vpack.c.b16 %v915, %v913
        %v940 = vpack.c.b16 %v918, %v916
        %v941 = vpack.c.b16 %v919, %v917
        %v942 = vpack.c.b16 %v922, %v920
        %v943 = vpack.c.b16 %v923, %v921
        %v944 = vpack.c.b16 %v926, %v924
        %v945 = vpack.c.b16 %v927, %v925
        %v946 = vpack.c.b16 %v930, %v928
        %v947 = vpack.c.b16 %v931, %v929
        %964 = vmatprep.subr.bf16.mxu0 %v947
        %965 = vmatpush1.bf16.msra.mxu0 %v946
        %966 = vmatprep.subr.bf16.mxu0 %v945
        %967 = vmatpush1.bf16.msra.mxu0 %v944
        %968 = vmatprep.subr.bf16.mxu0 %v943
        %969 = vmatpush1.bf16.msra.mxu0 %v942
        %970 = vmatprep.subr.bf16.mxu0 %v941
        %971 = vmatpush1.bf16.msra.mxu0 %v940
        %972 = vmatprep.subr.bf16.mxu0 %v939
        %973 = vmatpush1.bf16.msra.mxu0 %v938
        %974 = vmatprep.subr.bf16.mxu0 %v937
        %975 = vmatpush1.bf16.msra.mxu0 %v936
        %976 = vmatprep.subr.bf16.mxu0 %v935
        %977 = vmatpush1.bf16.msra.mxu0 %v934
        %978 = vmatprep.subr.bf16.mxu0 %v933
        %979 = vmatpush1.bf16.msra.mxu0 %v932
        %980 = vmatprep.subr.bf16.mxu0 0
        %981 = vmatpush2.bf16.msra.mxu0 0
        %982 = vmatprep.subr.bf16.mxu0 0
        %983 = vmatpush2.bf16.msra.mxu0 0
        %984 = vmatprep.subr.bf16.mxu0 0
        %985 = vmatpush2.bf16.msra.mxu0 0
        %986 = vmatprep.subr.bf16.mxu0 0
        %987 = vmatpush2.bf16.msra.mxu0 0
        %988 = vmatprep.subr.bf16.mxu0 0
        %989 = vmatpush2.bf16.msra.mxu0 0
        %990 = vmatprep.subr.bf16.mxu0 0
        %991 = vmatpush2.bf16.msra.mxu0 0
        %992 = vmatprep.subr.bf16.mxu0 0
        %993 = vmatpush2.bf16.msra.mxu0 0
        %994 = vmatprep.subr.bf16.mxu0 0
        %995 = vmatpush2.bf16.msra.mxu0 0
        %996 = vmatprep.mubr.bf16.mxu0 0
        %997 = vmatmul.mubr.bf16.gmra.mxu0 %v848
        %v998 = vpop.f32.mrf.mxu0
        %v999 = vadd.f32 %v877, %v998
        %v1000 = vpop.f32.mrf.mxu0
        %v1001 = vadd.f32 %v881, %v1000
        %v1002 = vpop.f32.mrf.mxu0
        %v1003 = vadd.f32 %v877, %v1002
        %v1004 = vpop.f32.mrf.mxu0
        %v1005 = vadd.f32 %v881, %v1004
        %1006 = vmatprep.mubr.bf16.mxu0 0
        %1007 = vmatmul.mubr.bf16.gmra.mxu0 %v849
        %v1008 = vpop.f32.mrf.mxu0
        %v1009 = vadd.f32 %v877, %v1008
        %v1010 = vpop.f32.mrf.mxu0
        %v1011 = vadd.f32 %v881, %v1010
        %v1012 = vpop.f32.mrf.mxu0
        %v1013 = vadd.f32 %v877, %v1012
        %v1014 = vpop.f32.mrf.mxu0
        %v1015 = vadd.f32 %v881, %v1014
        %1016 = vmatprep.mubr.bf16.mxu0 0
        %1017 = vmatmul.mubr.bf16.gmra.mxu0 %v850
        %v1018 = vpop.f32.mrf.mxu0
        %v1019 = vadd.f32 %v877, %v1018
        %v1020 = vpop.f32.mrf.mxu0
        %v1021 = vadd.f32 %v881, %v1020
        %v1022 = vpop.f32.mrf.mxu0
        %v1023 = vadd.f32 %v877, %v1022
        %v1024 = vpop.f32.mrf.mxu0
        %v1025 = vadd.f32 %v881, %v1024
        %1026 = vmatprep.mubr.bf16.mxu0 0
        %1027 = vmatmul.mubr.bf16.gmra.mxu0 %v851
        %v1028 = vpop.f32.mrf.mxu0
        %v1029 = vadd.f32 %v877, %v1028
        %v1030 = vpop.f32.mrf.mxu0
        %v1031 = vadd.f32 %v881, %v1030
        %v1032 = vpop.f32.mrf.mxu0
        %v1033 = vadd.f32 %v877, %v1032
        %v1034 = vpop.f32.mrf.mxu0
        %v1035 = vadd.f32 %v881, %v1034
        %1036 = vmatprep.mubr.bf16.mxu0 0
        %1037 = vmatmul.mubr.bf16.gmra.mxu0 %v852
        %v1038 = vpop.f32.mrf.mxu0
        %v1039 = vadd.f32 %v877, %v1038
        %v1040 = vpop.f32.mrf.mxu0
        %v1041 = vadd.f32 %v881, %v1040
        %v1042 = vpop.f32.mrf.mxu0
        %v1043 = vadd.f32 %v877, %v1042
        %v1044 = vpop.f32.mrf.mxu0
        %v1045 = vadd.f32 %v881, %v1044
        %1046 = vmatprep.mubr.bf16.mxu0 0
        %1047 = vmatmul.mubr.bf16.gmra.mxu0 %v853
        %v1048 = vpop.f32.mrf.mxu0
        %v1049 = vadd.f32 %v877, %v1048
        %v1050 = vpop.f32.mrf.mxu0
        %v1051 = vadd.f32 %v881, %v1050
        %v1052 = vpop.f32.mrf.mxu0
        %v1053 = vadd.f32 %v877, %v1052
        %v1054 = vpop.f32.mrf.mxu0
        %v1055 = vadd.f32 %v881, %v1054
        %1056 = vmatprep.mubr.bf16.mxu0 0
        %1057 = vmatmul.mubr.bf16.gmra.mxu0 %v854
        %v1058 = vpop.f32.mrf.mxu0
        %v1059 = vadd.f32 %v877, %v1058
        %v1060 = vpop.f32.mrf.mxu0
        %v1061 = vadd.f32 %v881, %v1060
        %v1062 = vpop.f32.mrf.mxu0
        %v1063 = vadd.f32 %v877, %v1062
        %v1064 = vpop.f32.mrf.mxu0
        %v1065 = vadd.f32 %v881, %v1064
        %1066 = vmatprep.mubr.bf16.mxu0 0
        %1067 = vmatmul.mubr.bf16.gmra.mxu0 %v855
        %v1068 = vpop.f32.mrf.mxu0
        %v1069 = vadd.f32 %v877, %v1068
        %v1070 = vpop.f32.mrf.mxu0
        %v1071 = vadd.f32 %v881, %v1070
        %v1072 = vpop.f32.mrf.mxu0
        %v1073 = vadd.f32 %v877, %v1072
        %v1074 = vpop.f32.mrf.mxu0
        %v1075 = vadd.f32 %v881, %v1074
        %1076 = vdwg.mxu0
        %1077 = vst [vmem:[%s340] sm:$0xff] %v999
        %1078 = vst [vmem:[%s340 + $0x8] sm:$0xff] %v1001
        %1079 = vst [vmem:[%s340 + $0x10] sm:$0xff] %v1003
        %1080 = vst [vmem:[%s340 + $0x18] sm:$0xff] %v1005
        %1081 = vst [vmem:[%s340 + $0x20] sm:$0xff] %v1009
        %1082 = vst [vmem:[%s340 + $0x28] sm:$0xff] %v1011
        %1083 = vst [vmem:[%s340 + $0x30] sm:$0xff] %v1013
        %1084 = vst [vmem:[%s340 + $0x38] sm:$0xff] %v1015
        %1085 = vst [vmem:[%s340 + $0x40] sm:$0xff] %v1019
        %1086 = vst [vmem:[%s340 + $0x48] sm:$0xff] %v1021
        %1087 = vst [vmem:[%s340 + $0x50] sm:$0xff] %v1023
        %1088 = vst [vmem:[%s340 + $0x58] sm:$0xff] %v1025
        %1089 = vst [vmem:[%s340 + $0x60] sm:$0xff] %v1029
        %1090 = vst [vmem:[%s340 + $0x68] sm:$0xff] %v1031
        %1091 = vst [vmem:[%s340 + $0x70] sm:$0xff] %v1033
        %1092 = vst [vmem:[%s340 + $0x78] sm:$0xff] %v1035
        %1093 = vst [vmem:[%s340 + $0x80] sm:$0xff] %v1039
        %1094 = vst [vmem:[%s340 + $0x88] sm:$0xff] %v1041
        %1095 = vst [vmem:[%s340 + $0x90] sm:$0xff] %v1043
        %1096 = vst [vmem:[%s340 + $0x98] sm:$0xff] %v1045
        %1097 = vst [vmem:[%s340 + $0xa0] sm:$0xff] %v1049
        %1098 = vst [vmem:[%s340 + $0xa8] sm:$0xff] %v1051
        %1099 = vst [vmem:[%s340 + $0xb0] sm:$0xff] %v1053
        %1100 = vst [vmem:[%s340 + $0xb8] sm:$0xff] %v1055
        %1101 = vst [vmem:[%s340 + $0xc0] sm:$0xff] %v1059
        %1102 = vst [vmem:[%s340 + $0xc8] sm:$0xff] %v1061
        %1103 = vst [vmem:[%s340 + $0xd0] sm:$0xff] %v1063
        %1104 = vst [vmem:[%s340 + $0xd8] sm:$0xff] %v1065
        %1105 = vst [vmem:[%s340 + $0xe0] sm:$0xff] %v1069
        %1106 = vst [vmem:[%s340 + $0xe8] sm:$0xff] %v1071
        %1107 = vst [vmem:[%s340 + $0xf0] sm:$0xff] %v1073
        %1108 = vst [vmem:[%s340 + $0xf8] sm:$0xff] %v1075
        %s1109 = sand.u32 %s186, 1
        %s1110 = scalar_lea.sflag [#allocation4], %s1109
        %s1111 = sand.u32 %s186, 1
        %s1112 = smul.addr %s1111, 256
        %s1113 = scalar_lea.vmem [#allocation10], %s1112
        // Predicated region
        $region65: #{tpu_custom_call.1} parent=47 // pred_check
          %p1114 = pneg %p196
        $region66: #{tpu_custom_call.1} parent=47 // pred_check_branch
          %1116 = sbr.rel (%p1114) target = $region68
        $region67: #{tpu_custom_call.1} parent=47 // pred_region
          %s1117 = smul.u32 16, %s26
          %s1119 = ssub.s32 4096, 4096
          %1120 = vsyncadd %s1110, %s1119
          %s1121 = smul.addr %s1117, 2
          %s1122 = smul.addr %s1121, 128
          %s1123 = scalar_lea.hbm %s7, %s1122
          %s1124 = sshll.u32 %s1113, 4
          %s1125 = int_to_ptr.vmem [resolvable:$true] %s1124
          %1130 = dma.vmem_to_hbm [thread:$0]  %s1125, 4096, %s1123, %s1110, 256, 256, 16
        $region68: #{tpu_custom_call.1} parent=47 // pred_fallthru
          _
      $region48: #{tpu_custom_call.1} parent=5 // pred_fallthru
        _
      %p1131 = scmp.le.s32.totalorder 2, %s21
      // Predicated region
      $region69: #{tpu_custom_call.1} parent=5 // pred_check
        %p1132 = pneg %p1131
      $region70: #{tpu_custom_call.1} parent=5 // pred_check_branch
        %1134 = sbr.rel (%p1132) target = $region72
      $region71: #{tpu_custom_call.1} parent=5 // pred_region
        %s1135 = ssub.s32 %s21, 2
        // Predicated region
        $region73: #{tpu_custom_call.1} parent=71 // pred_check
          %p1136 = pneg %p202
        $region74: #{tpu_custom_call.1} parent=71 // pred_check_branch
          %1138 = sbr.rel (%p1136) target = $region76
        $region75: #{tpu_custom_call.1} parent=71 // pred_region
          %s1139 = sand.u32 %s187, 1
          %s1140 = scalar_lea.sflag [#allocation4], %s1139
          %s1141 = sand.u32 %s187, 1
          %s1142 = smul.addr %s1141, 256
          %s1143 = scalar_lea.vmem [#allocation10], %s1142
          %1144 = dma.done %s1140, 4096
        $region76: #{tpu_custom_call.1} parent=71 // pred_fallthru
          _
      $region72: #{tpu_custom_call.1} parent=5 // pred_fallthru
        _
    $region6: #{tpu_custom_call.1} parent=1 // loop_footer
      %s25 = sadd.s32 1, %s21
    $region7: #{tpu_custom_call.1} parent=1 // loop_footer_branch
      %20 = sbr.rel target = $region3
    $region8: #{tpu_custom_call.1} parent=1 // loop_exit
      _
    %1145 = vsyncpa [#allocation3], 1
    %s1146 = scalar_lea.sflag [#allocation3], 1
    %1147 = vsyncpa %s1146, 1
    %1148 = vsyncpa [#allocation6], 1
    %1149 = vsyncpa [#allocation9], 1
    %1150 = vsyncpa [#allocation4], 1
    %s1151 = scalar_lea.sflag [#allocation4], 1
    %1152 = vsyncpa %s1151, 1

</llo_original>
